<compile_context>
chip_gen: v6e
topology: v6e:2x2x1
jax: 0.10.0
libtpu: 0.0.40
codegen_flags: <defaults>
</compile_context>

<pallas_src>
import functools

import jax
import jax.numpy as jnp
from jax import lax
from jax.experimental import pallas as pl
from jax.experimental.pallas import tpu as pltpu

_I32_MAX = jnp.iinfo(jnp.int32).max


def _argmax_kernel(x_ref, oval_ref, oidx_ref, val_acc, row_acc, *,
                   total_rows, steps_per_part, part_block_off, last_part):
    p = pl.program_id(0)                    # partition (TensorCore on v7x)
    i = pl.program_id(1)                    # streaming step within partition
    tr, C = x_ref.shape
    G = tr // 8                             # wrapper guarantees tr % 8 == 0
    row0 = (p * part_block_off + i) * tr    # global row of this block's first row

    # Reset the per-partition accumulators at the first step of each partition.
    @pl.when(i == 0)
    def _():
        val_acc[...] = jnp.full((8, C), -jnp.inf, dtype=jnp.float32)
        row_acc[...] = jnp.zeros((8, C), dtype=jnp.int32)

    def load_group(g):
        off = pl.multiple_of(g * 8, 8)
        return x_ref[pl.ds(off, 8), :]

    def fold_and_merge(get_group):
        # Fold the (tr, C) block into an (8, C) per-position running max plus
        # the 8-row group index that produced it.  The carry is value-carried
        # (register resident): no accumulator loads/stores in the hot loop.
        def body(g, carry):
            bval, brow = carry
            v = get_group(g)
            take = v > bval                 # strict '>' keeps the earliest row
            return jnp.where(take, v, bval), jnp.where(take, g, brow)

        init = (get_group(0), jnp.zeros((8, C), dtype=jnp.int32))
        if G > 1:
            bval, brow = lax.fori_loop(1, G, body, init, unroll=min(4, G - 1))
        else:
            bval, brow = init

        # Merge the block partial into the resident (8, C) accumulators.
        # This is touched once per block -> negligible VMEM traffic.
        rows = row0 + brow * 8 + lax.broadcasted_iota(jnp.int32, (8, C), 0)
        take = bval > val_acc[...]
        val_acc[...] = jnp.where(take, bval, val_acc[...])
        row_acc[...] = jnp.where(take, rows, row_acc[...])

    if total_rows % tr == 0:
        # Every block is full: no masking work at all on the hot path.
        fold_and_merge(load_group)
    else:
        # Only the very last block of the grid can be ragged; gate the mask.
        is_ragged = (p == last_part) & (i == steps_per_part - 1)

        @pl.when(jnp.logical_not(is_ragged))
        def _():
            fold_and_merge(load_group)

        @pl.when(is_ragged)
        def _():
            sub = lax.broadcasted_iota(jnp.int32, (8, 1), 0)

            def load_group_masked(g):
                r = row0 + g * 8 + sub
                return jnp.where(r < total_rows, load_group(g), -jnp.inf)

            fold_and_merge(load_group_masked)

    # Final per-partition cross-lane reduce: scalar max + smallest flat index
    # attaining it (first occurrence).  Runs once per partition.
    @pl.when(i == steps_per_part - 1)
    def _():
        vacc = val_acc[...]
        racc = row_acc[...]
        m = jnp.max(vacc)
        col = lax.broadcasted_iota(jnp.int32, (8, C), 1)
        flat = racc * C + col
        cand = jnp.where((vacc == m) & (racc < total_rows), flat, _I32_MAX)
        best = jnp.min(cand)
        oval_ref[...] = jnp.full(oval_ref.shape, m, dtype=oval_ref.dtype)
        oidx_ref[...] = jnp.full(oidx_ref.shape, best, dtype=oidx_ref.dtype)


def _round_up(x, m):
    return -(-x // m) * m


def _pick_lane_cols(n):
    """Pick a lane-dense width C (multiple of 128, <=1024 so the (8, C)
    accumulators stay register-resident).  Prefer widths dividing n exactly
    (zero-copy reshape); otherwise use a lane-dense prefix + short tail."""
    cands = (1024, 512, 256, 128)
    for c in cands:
        if n % c == 0 and n // c >= 8:
            return c, True
    for c in cands:
        if n // c >= 8:
            return c, False
    return 0, False


def argmax_flat(a: jax.Array) -> jax.Array:
    """torch.ops.aten.argmax(a) for a rank-2 float32 tensor -> flat index.

    Returns int32 (JAX x64 is off by default; torch returns int64).
    """
    assert a.ndim == 2 and a.dtype == jnp.float32
    n = a.shape[0] * a.shape[1]
    if n >= 2 ** 31:
        # TODO(synk): widen the index path to int64 for >= 2^31-element inputs.
        raise NotImplementedError("argmax_flat supports < 2^31 elements")

    flat = a.reshape(-1)                    # contiguous reshape: free
    C, exact = _pick_lane_cols(n)
    if C == 0:
        # Tiny input (< 1024 elements): a kernel launch is not worth it.
        return jnp.argmax(flat).astype(jnp.int32)

    R = n // C
    if exact:
        main = a.reshape(R, C)              # zero-copy lane-dense view
    else:
        # Lane-dense prefix (one copy) + short (<C elements) tail, combined
        # below.  Still far better than streaming a lane-sparse layout.
        main = flat[: R * C].reshape(R, C)

    # ---- block sizing ----------------------------------------------------
    # ~4-8 MiB of f32 per input block (double-buffered <= 16 MiB: fits the
    # scoped VMEM limit on v5e/v6e and stays well under v7x's 64 MiB VMEM).
    target_bytes = 4 * 1024 * 1024
    try:  # use bigger blocks on generations with 128 MiB VMEM (v5e/v6e)
        if getattr(pltpu.get_tpu_info(), "vmem_capacity_bytes", 0) >= 100 * 2 ** 20:
            target_bytes = 8 * 1024 * 1024
    except Exception:
        pass
    tr_target = max(8, (target_bytes // (C * 4)) // 8 * 8)
    r_down8 = (R // 8) * 8                                  # >= 8 by construction
    half = max(8, _round_up(_round_up(R, 2) // 2, 8))       # balance the 2-way split
    tr = min(tr_target, r_down8, half)

    total_blocks = -(-R // tr)
    num_parts = 2 if total_blocks >= 2 else 1               # one per v7x TensorCore
    steps_per_part = -(-total_blocks // num_parts)
    # Partition 1 starts so its blocks stay in bounds; a 1-block overlap with
    # partition 0 (odd block count) is harmless for max/argmax.
    part_block_off = total_blocks - steps_per_part

    kernel = functools.partial(
        _argmax_kernel,
        total_rows=R,
        steps_per_part=steps_per_part,
        part_block_off=part_block_off,
        last_part=num_parts - 1,
    )

    part_vals, part_idxs = pl.pallas_call(
        kernel,
        out_shape=(
            jax.ShapeDtypeStruct((num_parts, 8, 128), jnp.float32),
            jax.ShapeDtypeStruct((num_parts, 8, 128), jnp.int32),
        ),
        grid_spec=pltpu.PrefetchScalarGridSpec(
            num_scalar_prefetch=0,
            grid=(num_parts, steps_per_part),
            in_specs=[
                pl.BlockSpec((tr, C), lambda p, i: (p * part_block_off + i, 0)),
            ],
            out_specs=(
                pl.BlockSpec((1, 8, 128), lambda p, i: (p, 0, 0)),
                pl.BlockSpec((1, 8, 128), lambda p, i: (p, 0, 0)),
            ),
            scratch_shapes=[
                pltpu.VMEM((8, C), jnp.float32),   # resident per-position max
                pltpu.VMEM((8, C), jnp.int32),     # row id of that max
            ],
        ),
        compiler_params=pltpu.CompilerParams(
            # Leading axis = per-TensorCore partition (used by v7x megacore);
            # trailing axis is the streaming reduction with resident scratch.
            dimension_semantics=("parallel", "arbitrary"),
            vmem_limit_bytes=32 * 1024 * 1024,
        ),
        cost_estimate=pl.CostEstimate(
            flops=3 * R * C, transcendentals=0, bytes_accessed=R * C * 4),
    )(main)

    vals = part_vals[:, 0, 0]
    idxs = part_idxs[:, 0, 0]
    if not exact:
        tail = flat[R * C:]
        vals = jnp.concatenate([vals, jnp.max(tail)[None]])
        idxs = jnp.concatenate(
            [idxs, (jnp.argmax(tail).astype(jnp.int32) + jnp.int32(R * C))[None]])

    # Combine per-partition / tail partials: max value, ties -> smallest flat
    # index (first occurrence, matching torch).
    # TODO(synk): torch treats NaN as the maximum; this path ignores NaNs.
    m = jnp.max(vals)
    return jnp.min(jnp.where(vals == m, idxs, _I32_MAX))


if __name__ == "__main__":
    key = jax.random.PRNGKey(0)
    k1, k2, k3 = jax.random.split(key, 3)

    # 1) 128-aligned element count: zero-copy lane-dense reshape, 1 partition.
    a1 = jax.random.normal(k1, (64, 128), dtype=jnp.float32)
    r1 = jax.block_until_ready(argmax_flat(a1))
    assert int(r1) == int(jnp.argmax(a1)), (int(r1), int(jnp.argmax(a1)))

    # 2) Two partitions (v7x TensorCore split) + ragged last block masking.
    a2 = jax.random.normal(k2, (96, 256), dtype=jnp.float32)
    r2 = jax.block_until_ready(argmax_flat(a2))
    assert int(r2) == int(jnp.argmax(a2)), (int(r2), int(jnp.argmax(a2)))

    # 3) Non-128-divisible element count: lane-dense prefix + tail combine.
    a3 = jax.random.normal(k3, (33, 47), dtype=jnp.float32)
    r3 = jax.block_until_ready(argmax_flat(a3))
    assert int(r3) == int(jnp.argmax(a3)), (int(r3), int(jnp.argmax(a3)))

    # 4) All-equal input: first-occurrence tie-break -> index 0.
    a4 = jnp.zeros((16, 128), dtype=jnp.float32)
    r4 = jax.block_until_ready(argmax_flat(a4))
    assert int(r4) == 0, int(r4)

    print("KERNEL_OK")
</pallas_src>

<mosaic_0001>
module attributes {stable_mosaic.version = 11 : i64} {
  func.func @_argmax_kernel(%arg0: i32, %arg1: i32, %arg2: memref<8x1024xf32, #tpu.memory_space<vmem>>, %arg3: memref<1x8x128xf32, #tpu.memory_space<vmem>>, %arg4: memref<1x8x128xi32, #tpu.memory_space<vmem>>, %arg5: memref<8x1024xf32, #tpu.memory_space<vmem>>, %arg6: memref<8x1024xi32, #tpu.memory_space<vmem>>) attributes {dimension_semantics = [#tpu.dimension_semantics<parallel>, #tpu.dimension_semantics<arbitrary>], iteration_bounds = array<i64: 1, 1>, scalar_prefetch = 0 : i64, scratch_operands = 2 : i64, tpu.core_type = #tpu.core_type<tc>, window_params = [{transform_indices = @transform_0, window_bounds = array<i64: 8, 1024>}, {transform_indices = @transform_1, window_bounds = array<i64: 1, 8, 128>}, {transform_indices = @transform_2, window_bounds = array<i64: 1, 8, 128>}]} {
    %c0_i32 = arith.constant 0 : i32
    %0 = arith.muli %arg0, %c0_i32 : i32
    %1 = arith.addi %0, %arg1 : i32
    %c8_i32 = arith.constant 8 : i32
    %2 = arith.muli %1, %c8_i32 : i32
    %c0_i32_0 = arith.constant 0 : i32
    %3 = arith.cmpi eq, %arg1, %c0_i32_0 : i32
    %4 = arith.extui %3 : i1 to i32
    %c0_i32_1 = arith.constant 0 : i32
    %5 = arith.cmpi ne, %4, %c0_i32_1 : i32
    scf.if %5 {
      %cst = arith.constant 0xFF800000 : f32
      %27 = vector.broadcast %cst : f32 to vector<8x1024xf32>
      %c0_17 = arith.constant 0 : index
      %c0_18 = arith.constant 0 : index
      %28 = vector.load %arg5[%c0_17, %c0_18] : memref<8x1024xf32, #tpu.memory_space<vmem>>, vector<8x1024xf32>
      tpu.vector_store %arg5[%c0_17, %c0_18], %27 {strides = array<i32>} : memref<8x1024xf32, #tpu.memory_space<vmem>>, vector<8x1024xf32>,
      %c0_i32_19 = arith.constant 0 : i32
      %29 = vector.broadcast %c0_i32_19 : i32 to vector<8x1024xi32>
      %c0_20 = arith.constant 0 : index
      %c0_21 = arith.constant 0 : index
      %30 = vector.load %arg6[%c0_20, %c0_21] : memref<8x1024xi32, #tpu.memory_space<vmem>>, vector<8x1024xi32>
      tpu.vector_store %arg6[%c0_20, %c0_21], %29 {strides = array<i32>} : memref<8x1024xi32, #tpu.memory_space<vmem>>, vector<8x1024xi32>,
    } else {
    }
    %c0_i32_2 = arith.constant 0 : i32
    %6 = tpu.assume_multiple %c0_i32_2, 8 : i32
    %7 = arith.index_cast %6 : i32 to index
    %c0 = arith.constant 0 : index
    %8 = vector.load %arg2[%7, %c0] : memref<8x1024xf32, #tpu.memory_space<vmem>>, vector<8x1024xf32>
    %c0_i32_3 = arith.constant 0 : i32
    %9 = vector.broadcast %c0_i32_3 : i32 to vector<8x1024xi32>
    %c8_i32_4 = arith.constant 8 : i32
    %10 = vector.broadcast %c8_i32_4 : i32 to vector<8x1024xi32>
    %11 = arith.muli %9, %10 : vector<8x1024xi32>
    %12 = vector.broadcast %2 : i32 to vector<8x1024xi32>
    %13 = arith.addi %12, %11 : vector<8x1024xi32>
    %14 = tpu.iota {dimensions = array<i32: 0>} : vector<8x1024xi32>
    %15 = arith.addi %13, %14 : vector<8x1024xi32>
    %c0_5 = arith.constant 0 : index
    %c0_6 = arith.constant 0 : index
    %16 = vector.load %arg5[%c0_5, %c0_6] : memref<8x1024xf32, #tpu.memory_space<vmem>>, vector<8x1024xf32>
    %17 = arith.cmpf ogt, %8, %16 : vector<8x1024xf32>
    %c0_7 = arith.constant 0 : index
    %c0_8 = arith.constant 0 : index
    %18 = vector.load %arg5[%c0_7, %c0_8] : memref<8x1024xf32, #tpu.memory_space<vmem>>, vector<8x1024xf32>
    %19 = arith.select %17, %8, %18 : vector<8x1024xi1>, vector<8x1024xf32>
    %c0_9 = arith.constant 0 : index
    %c0_10 = arith.constant 0 : index
    %20 = vector.load %arg5[%c0_9, %c0_10] : memref<8x1024xf32, #tpu.memory_space<vmem>>, vector<8x1024xf32>
    tpu.vector_store %arg5[%c0_9, %c0_10], %19 {strides = array<i32>} : memref<8x1024xf32, #tpu.memory_space<vmem>>, vector<8x1024xf32>,
    %c0_11 = arith.constant 0 : index
    %c0_12 = arith.constant 0 : index
    %21 = vector.load %arg6[%c0_11, %c0_12] : memref<8x1024xi32, #tpu.memory_space<vmem>>, vector<8x1024xi32>
    %22 = arith.select %17, %15, %21 : vector<8x1024xi1>, vector<8x1024xi32>
    %c0_13 = arith.constant 0 : index
    %c0_14 = arith.constant 0 : index
    %23 = vector.load %arg6[%c0_13, %c0_14] : memref<8x1024xi32, #tpu.memory_space<vmem>>, vector<8x1024xi32>
    tpu.vector_store %arg6[%c0_13, %c0_14], %22 {strides = array<i32>} : memref<8x1024xi32, #tpu.memory_space<vmem>>, vector<8x1024xi32>,
    %c0_i32_15 = arith.constant 0 : i32
    %24 = arith.cmpi eq, %arg1, %c0_i32_15 : i32
    %25 = arith.extui %24 : i1 to i32
    %c0_i32_16 = arith.constant 0 : i32
    %26 = arith.cmpi ne, %25, %c0_i32_16 : i32
    scf.if %26 {
      %c0_17 = arith.constant 0 : index
      %c0_18 = arith.constant 0 : index
      %27 = vector.load %arg5[%c0_17, %c0_18] : memref<8x1024xf32, #tpu.memory_space<vmem>>, vector<8x1024xf32>
      %c0_19 = arith.constant 0 : index
      %c0_20 = arith.constant 0 : index
      %28 = vector.load %arg6[%c0_19, %c0_20] : memref<8x1024xi32, #tpu.memory_space<vmem>>, vector<8x1024xi32>
      %29 = vector.shape_cast %27 : vector<8x1024xf32> to vector<1x8x1024xf32>
      %cst = arith.constant dense<0xFF800000> : vector<1xf32>
      %30 = vector.multi_reduction <maximumf>, %29, %cst [1, 2] : vector<1x8x1024xf32> to vector<1xf32>
      %31 = vector.shape_cast %30 : vector<1xf32> to vector<1x1x1xf32>
      %32 = vector.extract %31[0, 0, 0] : f32 from vector<1x1x1xf32>
      %33 = tpu.iota {dimensions = array<i32: 1>} : vector<8x1024xi32>
      %c1024_i32 = arith.constant 1024 : i32
      %34 = vector.broadcast %c1024_i32 : i32 to vector<8x1024xi32>
      %35 = arith.muli %28, %34 : vector<8x1024xi32>
      %36 = arith.addi %35, %33 : vector<8x1024xi32>
      %37 = vector.broadcast %32 : f32 to vector<8x1024xf32>
      %38 = arith.cmpf oeq, %27, %37 : vector<8x1024xf32>
      %c8_i32_21 = arith.constant 8 : i32
      %39 = vector.broadcast %c8_i32_21 : i32 to vector<8x1024xi32>
      %40 = arith.cmpi slt, %28, %39 : vector<8x1024xi32>
      %41 = arith.andi %38, %40 : vector<8x1024xi1>
      %c2147483647_i32 = arith.constant 2147483647 : i32
      %42 = vector.broadcast %c2147483647_i32 : i32 to vector<8x1024xi32>
      %43 = arith.select %41, %36, %42 : vector<8x1024xi1>, vector<8x1024xi32>
      %44 = vector.shape_cast %43 : vector<8x1024xi32> to vector<1x8x1024xi32>
      %cst_22 = arith.constant dense<2147483647> : vector<1xi32>
      %45 = vector.multi_reduction <minsi>, %44, %cst_22 [1, 2] : vector<1x8x1024xi32> to vector<1xi32>
      %46 = vector.shape_cast %45 : vector<1xi32> to vector<1x1x1xi32>
      %47 = vector.extract %46[0, 0, 0] : i32 from vector<1x1x1xi32>
      %48 = vector.broadcast %32 : f32 to vector<1x8x128xf32>
      %c0_23 = arith.constant 0 : index
      %c0_24 = arith.constant 0 : index
      %c0_25 = arith.constant 0 : index
      %49 = vector.load %arg3[%c0_23, %c0_24, %c0_25] : memref<1x8x128xf32, #tpu.memory_space<vmem>>, vector<1x8x128xf32>
      tpu.vector_store %arg3[%c0_23, %c0_24, %c0_25], %48 {strides = array<i32>} : memref<1x8x128xf32, #tpu.memory_space<vmem>>, vector<1x8x128xf32>,
      %50 = vector.broadcast %47 : i32 to vector<1x8x128xi32>
      %c0_26 = arith.constant 0 : index
      %c0_27 = arith.constant 0 : index
      %c0_28 = arith.constant 0 : index
      %51 = vector.load %arg4[%c0_26, %c0_27, %c0_28] : memref<1x8x128xi32, #tpu.memory_space<vmem>>, vector<1x8x128xi32>
      tpu.vector_store %arg4[%c0_26, %c0_27, %c0_28], %50 {strides = array<i32>} : memref<1x8x128xi32, #tpu.memory_space<vmem>>, vector<1x8x128xi32>,
    } else {
    }
    return
  }
  func.func @transform_0(%arg0: i32, %arg1: i32) -> (i32, i32) {
    %c0_i32 = arith.constant 0 : i32
    %0 = arith.muli %arg0, %c0_i32 : i32
    %1 = arith.addi %0, %arg1 : i32
    %c0_i32_0 = arith.constant 0 : i32
    %c0_i32_1 = arith.constant 0 : i32
    return %1, %c0_i32_0 : i32, i32
  }
  func.func @transform_1(%arg0: i32, %arg1: i32) -> (i32, i32, i32) {
    %c0_i32 = arith.constant 0 : i32
    %c0_i32_0 = arith.constant 0 : i32
    %c0_i32_1 = arith.constant 0 : i32
    return %arg0, %c0_i32, %c0_i32_0 : i32, i32, i32
  }
  func.func @transform_2(%arg0: i32, %arg1: i32) -> (i32, i32, i32) {
    %c0_i32 = arith.constant 0 : i32
    %c0_i32_0 = arith.constant 0 : i32
    %c0_i32_1 = arith.constant 0 : i32
    return %arg0, %c0_i32, %c0_i32_0 : i32, i32, i32
  }
}

</mosaic_0001>

<llo_original>
// kernel: tpu_custom_call.1
$region0: #{tpu_custom_call.1}
  #allocation0 [shape = 'u32[]', space=smem, size = 0x4, offset = 0x4, fixed_abs, tag = 'smem constant byte address 0x4 - core index']
  #allocation1 [shape = 'u32[144,128]{1,0:T(1,128)}', space=vmem, size = 0x12000, scoped, tag = 'internal scratch']
  #allocation2 [shape = 'f32[8,1024]{1,0:T(8,128)}', space=vmem, size = 0x8000, scoped, tag = 'scratch operand']
  #allocation3 [shape = 's32[8,1024]{1,0:T(8,128)}', space=vmem, size = 0x8000, scoped, tag = 'scratch operand']
  %s0 = inlined_call_operand.hbm [shape: f32[8,1024], index: 0, kind: input, shape index: {}]
  %s1 = inlined_call_operand.hbm [shape: f32[1,8,128], index: 1, kind: output, shape index: {0}]
  %s2 = inlined_call_operand.hbm [shape: s32[1,8,128], index: 2, kind: output, shape index: {1}]
  %3 = xla_tuple %s1, %s2
  %s4 = sld [smem:[#allocation0]]
  $region34: #{tpu_custom_call.1} parent=0
    _
  %s6 = ssub.s32 1, %s4
  %s7 = scalar_select 0, %s6, %s4
  $region1: #{tpu_custom_call.1} parent=0
    #allocation4 [shape = 'u8[32768]{0}', space=vmem, size = 0x8000, scoped, tag = 'input window, operand 0, single buffered']
    #allocation5 [shape = 's32[1]{0}', space=sflag, size = 0x4, scoped, tag = 'scoped memory for tpu_custom_call.1']
    #allocation6 [shape = 's32[1]{0}', space=sflag, size = 0x4, scoped, tag = 'scoped memory for tpu_custom_call.1']
    #allocation7 [shape = 'u8[4096]{0}', space=vmem, size = 0x1000, scoped, tag = 'output window, operand 0, single buffered']
    #allocation8 [shape = 'u8[4096]{0}', space=vmem, size = 0x1000, scoped, tag = 'output window, operand 1, single buffered']
    #allocation9 [shape = 's32[1]{0}', space=sflag, size = 0x4, scoped, tag = 'scoped memory for tpu_custom_call.1']
    %8 = vsyncpa [#allocation5], 0
    %9 = vsyncpa [#allocation6], 0
    %10 = vsyncpa [#allocation9], 0
    // Predicated region
    $region2: #{tpu_custom_call.1} parent=1 // pred_check
      _
    $region3: #{tpu_custom_call.1} parent=1 // pred_check_branch
      %12 = sbr.rel (0) target = $region5
    $region4: #{tpu_custom_call.1} parent=1 // pred_region
      %s14 = ssub.s32 1024, 1024
      %15 = vsyncadd [#allocation5], %s14
      %s17 = sshll.u32 [#allocation4], 4
      %s18 = int_to_ptr.vmem [resolvable:$true] %s17
      %20 = dma.hbm_to_vmem [thread:$0]  %s0, 1024, %s18, [#allocation5]
    $region5: #{tpu_custom_call.1} parent=1 // pred_fallthru
      _
    // Predicated region
    $region6: #{tpu_custom_call.1} parent=1 // pred_check
      _
    $region7: #{tpu_custom_call.1} parent=1 // pred_check_branch
      %22 = sbr.rel (0) target = $region9
    $region8: #{tpu_custom_call.1} parent=1 // pred_region
      %23 = dma.done [#allocation5], 1024
    $region9: #{tpu_custom_call.1} parent=1 // pred_fallthru
      _
    %s24 = smul.u32 0, 8
    %p25 = scmp.eq.s32.totalorder 0, 0
    // Predicated region
    $region10: #{tpu_custom_call.1} parent=1 // pred_check
      %p26 = pneg %p25
    $region11: #{tpu_custom_call.1} parent=1 // pred_check_branch
      %28 = sbr.rel (%p26) target = $region13
    $region12: #{tpu_custom_call.1} parent=1 // pred_region
      %29 = vst [vmem:[#allocation2] sm:$0xff] -inf
      %30 = vst [vmem:[#allocation2 + $0x8] sm:$0xff] -inf
      %31 = vst [vmem:[#allocation2 + $0x10] sm:$0xff] -inf
      %32 = vst [vmem:[#allocation2 + $0x18] sm:$0xff] -inf
      %33 = vst [vmem:[#allocation2 + $0x20] sm:$0xff] -inf
      %34 = vst [vmem:[#allocation2 + $0x28] sm:$0xff] -inf
      %35 = vst [vmem:[#allocation2 + $0x30] sm:$0xff] -inf
      %36 = vst [vmem:[#allocation2 + $0x38] sm:$0xff] -inf
      %37 = vst [vmem:[#allocation3] sm:$0xff] 0
      %38 = vst [vmem:[#allocation3 + $0x8] sm:$0xff] 0
      %39 = vst [vmem:[#allocation3 + $0x10] sm:$0xff] 0
      %40 = vst [vmem:[#allocation3 + $0x18] sm:$0xff] 0
      %41 = vst [vmem:[#allocation3 + $0x20] sm:$0xff] 0
      %42 = vst [vmem:[#allocation3 + $0x28] sm:$0xff] 0
      %43 = vst [vmem:[#allocation3 + $0x30] sm:$0xff] 0
      %44 = vst [vmem:[#allocation3 + $0x38] sm:$0xff] 0
    $region13: #{tpu_custom_call.1} parent=1 // pred_fallthru
      _
    %s45 = smul.u32 0, 8
    %s46 = smul.addr %s45, 8
    %s47 = scalar_lea.vmem [#allocation4], %s46
    %v48 = vld [vmem:[%s47] sm:$0xff]
    %v49 = vld [vmem:[%s47 + $0x8] sm:$0xff]
    %v50 = vld [vmem:[%s47 + $0x10] sm:$0xff]
    %v51 = vld [vmem:[%s47 + $0x18] sm:$0xff]
    %v52 = vld [vmem:[%s47 + $0x20] sm:$0xff]
    %v53 = vld [vmem:[%s47 + $0x28] sm:$0xff]
    %v54 = vld [vmem:[%s47 + $0x30] sm:$0xff]
    %v55 = vld [vmem:[%s47 + $0x38] sm:$0xff]
    %v56 = vstv %s24
    %v57 = vlaneseq
    %v58 = vshrl.u32 %v57, 7
    %v59 = vadd.s32 %v56, %v58
    %v60 = vld [vmem:[#allocation2] sm:$0xff]
    %v61 = vld [vmem:[#allocation2 + $0x8] sm:$0xff]
    %v62 = vld [vmem:[#allocation2 + $0x10] sm:$0xff]
    %v63 = vld [vmem:[#allocation2 + $0x18] sm:$0xff]
    %v64 = vld [vmem:[#allocation2 + $0x20] sm:$0xff]
    %v65 = vld [vmem:[#allocation2 + $0x28] sm:$0xff]
    %v66 = vld [vmem:[#allocation2 + $0x30] sm:$0xff]
    %v67 = vld [vmem:[#allocation2 + $0x38] sm:$0xff]
    %vm68 = vcmp.gt.f32.partialorder %v48, %v60
    %vm69 = vcmp.gt.f32.partialorder %v49, %v61
    %vm70 = vcmp.gt.f32.partialorder %v50, %v62
    %vm71 = vcmp.gt.f32.partialorder %v51, %v63
    %vm72 = vcmp.gt.f32.partialorder %v52, %v64
    %vm73 = vcmp.gt.f32.partialorder %v53, %v65
    %vm74 = vcmp.gt.f32.partialorder %v54, %v66
    %vm75 = vcmp.gt.f32.partialorder %v55, %v67
    %v76 = vsel %vm68, %v48, %v60
    %v77 = vsel %vm69, %v49, %v61
    %v78 = vsel %vm70, %v50, %v62
    %v79 = vsel %vm71, %v51, %v63
    %v80 = vsel %vm72, %v52, %v64
    %v81 = vsel %vm73, %v53, %v65
    %v82 = vsel %vm74, %v54, %v66
    %v83 = vsel %vm75, %v55, %v67
    %84 = vst [vmem:[#allocation2] sm:$0xff] %v76
    %85 = vst [vmem:[#allocation2 + $0x8] sm:$0xff] %v77
    %86 = vst [vmem:[#allocation2 + $0x10] sm:$0xff] %v78
    %87 = vst [vmem:[#allocation2 + $0x18] sm:$0xff] %v79
    %88 = vst [vmem:[#allocation2 + $0x20] sm:$0xff] %v80
    %89 = vst [vmem:[#allocation2 + $0x28] sm:$0xff] %v81
    %90 = vst [vmem:[#allocation2 + $0x30] sm:$0xff] %v82
    %91 = vst [vmem:[#allocation2 + $0x38] sm:$0xff] %v83
    %v92 = vld [vmem:[#allocation3] sm:$0xff]
    %v93 = vld [vmem:[#allocation3 + $0x8] sm:$0xff]
    %v94 = vld [vmem:[#allocation3 + $0x10] sm:$0xff]
    %v95 = vld [vmem:[#allocation3 + $0x18] sm:$0xff]
    %v96 = vld [vmem:[#allocation3 + $0x20] sm:$0xff]
    %v97 = vld [vmem:[#allocation3 + $0x28] sm:$0xff]
    %v98 = vld [vmem:[#allocation3 + $0x30] sm:$0xff]
    %v99 = vld [vmem:[#allocation3 + $0x38] sm:$0xff]
    %v100 = vsel %vm68, %v59, %v92
    %v101 = vsel %vm69, %v59, %v93
    %v102 = vsel %vm70, %v59, %v94
    %v103 = vsel %vm71, %v59, %v95
    %v104 = vsel %vm72, %v59, %v96
    %v105 = vsel %vm73, %v59, %v97
    %v106 = vsel %vm74, %v59, %v98
    %v107 = vsel %vm75, %v59, %v99
    %108 = vst [vmem:[#allocation3] sm:$0xff] %v100
    %109 = vst [vmem:[#allocation3 + $0x8] sm:$0xff] %v101
    %110 = vst [vmem:[#allocation3 + $0x10] sm:$0xff] %v102
    %111 = vst [vmem:[#allocation3 + $0x18] sm:$0xff] %v103
    %112 = vst [vmem:[#allocation3 + $0x20] sm:$0xff] %v104
    %113 = vst [vmem:[#allocation3 + $0x28] sm:$0xff] %v105
    %114 = vst [vmem:[#allocation3 + $0x30] sm:$0xff] %v106
    %115 = vst [vmem:[#allocation3 + $0x38] sm:$0xff] %v107
    // Predicated region
    $region14: #{tpu_custom_call.1} parent=1 // pred_check
      %p116 = pneg %p25
    $region15: #{tpu_custom_call.1} parent=1 // pred_check_branch
      %118 = sbr.rel (%p116) target = $region17
    $region16: #{tpu_custom_call.1} parent=1 // pred_region
      %v119 = vld [vmem:[#allocation2] sm:$0xff]
      %v120 = vld [vmem:[#allocation2 + $0x8] sm:$0xff]
      %v121 = vld [vmem:[#allocation2 + $0x10] sm:$0xff]
      %v122 = vld [vmem:[#allocation2 + $0x18] sm:$0xff]
      %v123 = vld [vmem:[#allocation2 + $0x20] sm:$0xff]
      %v124 = vld [vmem:[#allocation2 + $0x28] sm:$0xff]
      %v125 = vld [vmem:[#allocation2 + $0x30] sm:$0xff]
      %v126 = vld [vmem:[#allocation2 + $0x38] sm:$0xff]
      %v127 = vld [vmem:[#allocation3] sm:$0xff]
      %v128 = vld [vmem:[#allocation3 + $0x8] sm:$0xff]
      %v129 = vld [vmem:[#allocation3 + $0x10] sm:$0xff]
      %v130 = vld [vmem:[#allocation3 + $0x18] sm:$0xff]
      %v131 = vld [vmem:[#allocation3 + $0x20] sm:$0xff]
      %v132 = vld [vmem:[#allocation3 + $0x28] sm:$0xff]
      %v133 = vld [vmem:[#allocation3 + $0x30] sm:$0xff]
      %v134 = vld [vmem:[#allocation3 + $0x38] sm:$0xff]
      %v135 = vmax.f32 %v119, %v123
      %v136 = vmax.f32 %v120, %v124
      %v137 = vmax.f32 %v121, %v125
      %v138 = vmax.f32 %v122, %v126
      %v139 = vmax.f32 %v135, %v136
      %v140 = vmax.f32 %v137, %v138
      %v141 = vmax.f32 %v139, %v140
      %142 = vmax.xlane.f32.xlu0 %v141
      %v143 = vpop.xlane.xlu0 %142
      %v144 = vrot.slane %v143, 4
      %v145 = vmax.f32 %v143, %v144
      %v146 = vrot.slane %v145, 2
      %v147 = vmax.f32 %v145, %v146
      %v148 = vrot.slane %v147, 1
      %v149 = vmax.f32 %v147, %v148
      %s150 = vtos %v149
      %v151 = vlaneseq
      %v152 = vand.u32 %v151, 127
      %v153 = vadd.s32 %v152, 128
      %v154 = vadd.s32 %v152, 256
      %v155 = vadd.s32 %v152, 384
      %v156 = vadd.s32 %v152, 512
      %v157 = vadd.s32 %v152, 640
      %v158 = vadd.s32 %v152, 768
      %v159 = vadd.s32 %v152, 896
      %v160 = vmul.u32 %v127, 1024
      %v161 = vmul.u32 %v128, 1024
      %v162 = vmul.u32 %v129, 1024
      %v163 = vmul.u32 %v130, 1024
      %v164 = vmul.u32 %v131, 1024
      %v165 = vmul.u32 %v132, 1024
      %v166 = vmul.u32 %v133, 1024
      %v167 = vmul.u32 %v134, 1024
      %v168 = vadd.s32 %v160, %v152
      %v169 = vadd.s32 %v161, %v153
      %v170 = vadd.s32 %v162, %v154
      %v171 = vadd.s32 %v163, %v155
      %v172 = vadd.s32 %v164, %v156
      %v173 = vadd.s32 %v165, %v157
      %v174 = vadd.s32 %v166, %v158
      %v175 = vadd.s32 %v167, %v159
      %v176 = vstv %s150
      %vm177 = vcmp.eq.f32.partialorder %v119, %v176
      %vm178 = vcmp.eq.f32.partialorder %v120, %v176
      %vm179 = vcmp.eq.f32.partialorder %v121, %v176
      %vm180 = vcmp.eq.f32.partialorder %v122, %v176
      %vm181 = vcmp.eq.f32.partialorder %v123, %v176
      %vm182 = vcmp.eq.f32.partialorder %v124, %v176
      %vm183 = vcmp.eq.f32.partialorder %v125, %v176
      %vm184 = vcmp.eq.f32.partialorder %v126, %v176
      %vm185 = vcmp.lt.s32.totalorder %v127, 8
      %vm186 = vcmp.lt.s32.totalorder %v128, 8
      %vm187 = vcmp.lt.s32.totalorder %v129, 8
      %vm188 = vcmp.lt.s32.totalorder %v130, 8
      %vm189 = vcmp.lt.s32.totalorder %v131, 8
      %vm190 = vcmp.lt.s32.totalorder %v132, 8
      %vm191 = vcmp.lt.s32.totalorder %v133, 8
      %vm192 = vcmp.lt.s32.totalorder %v134, 8
      %vm193 = vmand %vm177, %vm185
      %vm194 = vmand %vm178, %vm186
      %vm195 = vmand %vm179, %vm187
      %vm196 = vmand %vm180, %vm188
      %vm197 = vmand %vm181, %vm189
      %vm198 = vmand %vm182, %vm190
      %vm199 = vmand %vm183, %vm191
      %vm200 = vmand %vm184, %vm192
      %v201 = vsel %vm193, %v168, 2147483647
      %v202 = vsel %vm194, %v169, 2147483647
      %v203 = vsel %vm195, %v170, 2147483647
      %v204 = vsel %vm196, %v171, 2147483647
      %v205 = vsel %vm197, %v172, 2147483647
      %v206 = vsel %vm198, %v173, 2147483647
      %v207 = vsel %vm199, %v174, 2147483647
      %v208 = vsel %vm200, %v175, 2147483647
      %vm209 = vcmp.lt.s32.totalorder %v201, %v205
      %v210 = vsel %vm209, %v201, %v205
      %vm211 = vcmp.lt.s32.totalorder %v202, %v206
      %v212 = vsel %vm211, %v202, %v206
      %vm213 = vcmp.lt.s32.totalorder %v203, %v207
      %v214 = vsel %vm213, %v203, %v207
      %vm215 = vcmp.lt.s32.totalorder %v204, %v208
      %v216 = vsel %vm215, %v204, %v208
      %vm217 = vcmp.lt.s32.totalorder %v210, %v212
      %v218 = vsel %vm217, %v210, %v212
      %vm219 = vcmp.lt.s32.totalorder %v214, %v216
      %v220 = vsel %vm219, %v214, %v216
      %vm221 = vcmp.lt.s32.totalorder %v218, %v220
      %v222 = vsel %vm221, %v218, %v220
      %v223 = vand.u32 %v222, 65535
      %v224 = vshra.s32 %v222, 16
      %v225 = vcvt.s32.f32 %v223
      %v226 = vcvt.s32.f32 %v224
      %227 = vmin.xlane.f32.xlu0 %v226
      %v228 = vpop.xlane.xlu0 %227
      %vm229 = vcmp.eq.f32.partialorder %v226, %v228
      %v230 = vsel %vm229, %v225, inf
      %231 = vmin.xlane.f32.xlu0 %v230
      %v232 = vpop.xlane.xlu0 %231
      %v233 = vcvt.f32.s32 %v232
      %v234 = vcvt.f32.s32 %v228
      %v235 = vshll.u32 %v234, 16
      %v236 = vadd.s32 %v235, %v233
      %v237 = vrot.slane %v236, 4
      %vm238 = vcmp.lt.s32.totalorder %v236, %v237
      %v239 = vsel %vm238, %v236, %v237
      %v240 = vrot.slane %v239, 2
      %vm241 = vcmp.lt.s32.totalorder %v239, %v240
      %v242 = vsel %vm241, %v239, %v240
      %v243 = vrot.slane %v242, 1
      %vm244 = vcmp.lt.s32.totalorder %v242, %v243
      %v245 = vsel %vm244, %v242, %v243
      %s246 = vtos %v245
      %247 = vst [vmem:[#allocation7] sm:$0xff] %v176
      %v248 = vstv %s246
      %249 = vst [vmem:[#allocation8] sm:$0xff] %v248
    $region17: #{tpu_custom_call.1} parent=1 // pred_fallthru
      _
    // Predicated region
    $region18: #{tpu_custom_call.1} parent=1 // pred_check
      _
    $region19: #{tpu_custom_call.1} parent=1 // pred_check_branch
      %251 = sbr.rel (0) target = $region21
    $region20: #{tpu_custom_call.1} parent=1 // pred_region
      %s253 = ssub.s32 128, 128
      %254 = vsyncadd [#allocation6], %s253
      %s256 = sshll.u32 [#allocation7], 4
      %s257 = int_to_ptr.vmem [resolvable:$true] %s256
      %259 = dma.vmem_to_hbm [thread:$0]  %s257, 128, %s1, [#allocation6]
    $region21: #{tpu_custom_call.1} parent=1 // pred_fallthru
      _
    // Predicated region
    $region22: #{tpu_custom_call.1} parent=1 // pred_check
      _
    $region23: #{tpu_custom_call.1} parent=1 // pred_check_branch
      %261 = sbr.rel (0) target = $region25
    $region24: #{tpu_custom_call.1} parent=1 // pred_region
      %s263 = ssub.s32 128, 128
      %264 = vsyncadd [#allocation9], %s263
      %s266 = sshll.u32 [#allocation8], 4
      %s267 = int_to_ptr.vmem [resolvable:$true] %s266
      %269 = dma.vmem_to_hbm [thread:$0]  %s267, 128, %s2, [#allocation9]
    $region25: #{tpu_custom_call.1} parent=1 // pred_fallthru
      _
    // Predicated region
    $region26: #{tpu_custom_call.1} parent=1 // pred_check
      _
    $region27: #{tpu_custom_call.1} parent=1 // pred_check_branch
      %271 = sbr.rel (0) target = $region29
    $region28: #{tpu_custom_call.1} parent=1 // pred_region
      %272 = dma.done [#allocation6], 128
    $region29: #{tpu_custom_call.1} parent=1 // pred_fallthru
      _
    // Predicated region
    $region30: #{tpu_custom_call.1} parent=1 // pred_check
      _
    $region31: #{tpu_custom_call.1} parent=1 // pred_check_branch
      %274 = sbr.rel (0) target = $region33
    $region32: #{tpu_custom_call.1} parent=1 // pred_region
      %275 = dma.done [#allocation9], 128
    $region33: #{tpu_custom_call.1} parent=1 // pred_fallthru
      _
    %276 = vsyncpa [#allocation5], 1
    %277 = vsyncpa [#allocation6], 1
    %278 = vsyncpa [#allocation9], 1

</llo_original>
